<compile_context>
chip_gen: v7x
topology: tpu7x:2x2x1
jax: 0.10.0
libtpu: 0.0.40
codegen_flags: <defaults>
</compile_context>

<pallas_src>
import math

import jax
import jax.numpy as jnp
from jax.experimental import pallas as pl
from jax.experimental.pallas import tpu as pltpu


def _round_up(x, m):
    return ((x + m - 1) // m) * m


def _ssm_kernel(z_ref, w_ref, b_ref, o_ref):
    # One fused GEMM on the MXU (f32 accumulation) + single bias add (VPU).
    acc = jnp.dot(z_ref[...], w_ref[...], preferred_element_type=jnp.float32)
    o_ref[...] = (acc + b_ref[...]).astype(o_ref.dtype)


def pack_params(raw_params, nx, lane_pad=128):
    """Pre-concatenate weights, pre-sum biases, pad output dim to lane width.

    raw_params: (wx [nx,nx], bx [nx], wu [nu,nx], bu [nx], wd [nd,nx], bd [nx])
                with weights already stored as [in_features, out_features].
    Returns (w_cat [nx+nu+nd, N_pad], b_sum [1, N_pad]).
    """
    wx, bx, wu, bu, wd, bd = raw_params
    w_cat = jnp.concatenate([wx, wu, wd], axis=0)          # [K, nx]
    b_sum = (bx + bu + bd).reshape(1, nx)                   # [1, nx]
    n_pad = _round_up(nx, lane_pad)
    if n_pad != nx:
        w_cat = jnp.pad(w_cat, ((0, 0), (0, n_pad - nx)))
        b_sum = jnp.pad(b_sum, ((0, 0), (0, n_pad - nx)))
    return w_cat, b_sum


def ssm_forward(x, u, d, packed_params, *, tm=512):
    """x: [B, nx], u: [B, nu], d: [B, nd]  ->  [B, nx]."""
    w_cat, b_sum = packed_params
    B, nx = x.shape
    K = x.shape[1] + u.shape[1] + d.shape[1]
    n_pad = w_cat.shape[1]
    assert w_cat.shape[0] == K

    # Single concatenated operand for the fused GEMM.
    z = jnp.concatenate([x, u, d], axis=1)                  # [B, K]

    # Tile the batch; keep tiles sublane-aligned (multiple of 8).
    tm = min(tm, _round_up(B, 8))
    b_pad = _round_up(B, tm)
    if b_pad != B:
        z = jnp.pad(z, ((0, b_pad - B), (0, 0)))

    grid = (b_pad // tm,)

    out = pl.pallas_call(
        _ssm_kernel,
        out_shape=jax.ShapeDtypeStruct((b_pad, n_pad), x.dtype),
        grid=grid,
        in_specs=[
            pl.BlockSpec((tm, K), lambda i: (i, 0)),        # activations: streamed per tile
            pl.BlockSpec((K, n_pad), lambda i: (0, 0)),     # fused weights: VMEM-resident
            pl.BlockSpec((1, n_pad), lambda i: (0, 0)),     # pre-summed bias: VMEM-resident
        ],
        out_specs=pl.BlockSpec((tm, n_pad), lambda i: (i, 0)),  # lane-dense output slab
        compiler_params=pltpu.CompilerParams(
            dimension_semantics=("parallel",)),
    )(z, w_cat, b_sum)

    return out[:B, :nx]


def init_params(key, nx, nu, nd, dtype=jnp.float32):
    """Deterministic init mimicking nn.Linear's U(-1/sqrt(fan_in), 1/sqrt(fan_in)).

    Returns "raw" per-layer params (weights stored as [in, out]) so the pure-JAX
    reference can be computed exactly like the PyTorch module; pack with
    pack_params() before calling the kernel.
    """
    ks = jax.random.split(key, 6)

    def lin(kw, kb, fan_in, fan_out):
        bound = 1.0 / math.sqrt(fan_in)
        w = jax.random.uniform(kw, (fan_in, fan_out), dtype, -bound, bound)
        b = jax.random.uniform(kb, (fan_out,), dtype, -bound, bound)
        return w, b

    wx, bx = lin(ks[0], ks[1], nx, nx)
    wu, bu = lin(ks[2], ks[3], nu, nx)
    wd, bd = lin(ks[4], ks[5], nd, nx)
    return (wx, bx, wu, bu, wd, bd)


def ssm_reference(x, u, d, raw_params):
    wx, bx, wu, bu, wd, bd = raw_params
    return (x @ wx + bx) + (u @ wu + bu) + (d @ wd + bd)


if __name__ == "__main__":
    B, nx, nu, nd = 8, 32, 16, 8

    key = jax.random.PRNGKey(0)
    kx, ku, kd, kp = jax.random.split(key, 4)

    x = jax.random.normal(kx, (B, nx), jnp.float32)
    u = jax.random.normal(ku, (B, nu), jnp.float32)
    d = jax.random.normal(kd, (B, nd), jnp.float32)

    raw_params = init_params(kp, nx, nu, nd)
    packed = pack_params(raw_params, nx)          # done once, not per call

    out = ssm_forward(x, u, d, packed)
    out = jax.block_until_ready(out)

    ref = ssm_reference(x, u, d, raw_params)
    assert out.shape == (B, nx)
    assert jnp.allclose(out, ref, atol=1e-5, rtol=1e-5), "mismatch vs reference"

    print("KERNEL_OK")
</pallas_src>

<mosaic_0001>
module attributes {stable_mosaic.version = 11 : i64} {
  func.func @_ssm_kernel(%arg0: i32, %arg1: memref<8x56xf32, #tpu.memory_space<vmem>>, %arg2: memref<56x128xf32, #tpu.memory_space<vmem>>, %arg3: memref<1x128xf32, #tpu.memory_space<vmem>>, %arg4: memref<8x128xf32, #tpu.memory_space<vmem>>) attributes {dimension_semantics = [#tpu.dimension_semantics<parallel>], iteration_bounds = array<i64: 1>, scalar_prefetch = 0 : i64, scratch_operands = 0 : i64, tpu.core_type = #tpu.core_type<tc>, window_params = [{transform_indices = @transform_0, window_bounds = array<i64: 8, 56>}, {pipeline_mode = #tpu.pipeline_mode<synchronous>, transform_indices = @transform_1, window_bounds = array<i64: 56, 128>}, {pipeline_mode = #tpu.pipeline_mode<synchronous>, transform_indices = @transform_2, window_bounds = array<i64: 1, 128>}, {transform_indices = @transform_3, window_bounds = array<i64: 8, 128>}]} {
    %c0 = arith.constant 0 : index
    %c0_0 = arith.constant 0 : index
    %0 = vector.load %arg1[%c0, %c0_0] : memref<8x56xf32, #tpu.memory_space<vmem>>, vector<8x56xf32>
    %c0_1 = arith.constant 0 : index
    %c0_2 = arith.constant 0 : index
    %1 = vector.load %arg2[%c0_1, %c0_2] : memref<56x128xf32, #tpu.memory_space<vmem>>, vector<56x128xf32>
    %cst = arith.constant dense<0.000000e+00> : vector<8x128xf32>
    %2 = tpu.matmul %0, %1, %cst {dimension_numbers = #tpu.dot_dimension_numbers<[1], [0], [0], [1], [0, 0, 1, 1], [], []>} : vector<8x56xf32>, vector<56x128xf32>, vector<8x128xf32> -> vector<8x128xf32>
    %c0_3 = arith.constant 0 : index
    %c0_4 = arith.constant 0 : index
    %3 = vector.load %arg3[%c0_3, %c0_4] : memref<1x128xf32, #tpu.memory_space<vmem>>, vector<1x128xf32>
    %4 = vector.broadcast %3 : vector<1x128xf32> to vector<8x128xf32>
    %5 = arith.addf %2, %4 : vector<8x128xf32>
    %c0_5 = arith.constant 0 : index
    %c0_6 = arith.constant 0 : index
    %6 = vector.load %arg4[%c0_5, %c0_6] : memref<8x128xf32, #tpu.memory_space<vmem>>, vector<8x128xf32>
    tpu.vector_store %arg4[%c0_5, %c0_6], %5 {strides = array<i32>} : memref<8x128xf32, #tpu.memory_space<vmem>>, vector<8x128xf32>,
    return
  }
  func.func @transform_0(%arg0: i32) -> (i32, i32) {
    %c0_i32 = arith.constant 0 : i32
    %c0_i32_0 = arith.constant 0 : i32
    return %arg0, %c0_i32 : i32, i32
  }
  func.func @transform_1(%arg0: i32) -> (i32, i32) {
    %c0_i32 = arith.constant 0 : i32
    %c0_i32_0 = arith.constant 0 : i32
    %c0_i32_1 = arith.constant 0 : i32
    return %c0_i32, %c0_i32_0 : i32, i32
  }
  func.func @transform_2(%arg0: i32) -> (i32, i32) {
    %c0_i32 = arith.constant 0 : i32
    %c0_i32_0 = arith.constant 0 : i32
    %c0_i32_1 = arith.constant 0 : i32
    return %c0_i32, %c0_i32_0 : i32, i32
  }
  func.func @transform_3(%arg0: i32) -> (i32, i32) {
    %c0_i32 = arith.constant 0 : i32
    %c0_i32_0 = arith.constant 0 : i32
    return %arg0, %c0_i32 : i32, i32
  }
}

</mosaic_0001>

<llo_original>
// kernel: tpu_custom_call.1
$region0: #{tpu_custom_call.1}
  #allocation0 [shape = 'u32[]', space=smem, size = 0x4, offset = 0x4, fixed_abs, tag = 'smem constant byte address 0x4 - core index']
  #allocation1 [shape = 'u32[144,128]{1,0:T(1,128)}', space=vmem, size = 0x12000, scoped, tag = 'internal scratch']
  %s0 = inlined_call_operand.hbm [shape: f32[8,56], index: 0, kind: input, shape index: {}]
  %s1 = inlined_call_operand.hbm [shape: f32[56,128], index: 1, kind: input, shape index: {}]
  %s2 = inlined_call_operand.vmem [shape: f32[1,128], index: 2, kind: input, shape index: {}]
  %s3 = inlined_call_operand.hbm [shape: f32[8,128], index: 3, kind: output, shape index: {}]
  %s4 = sld [smem:[#allocation0]]
  $region30: #{tpu_custom_call.1} parent=0
    _
  %s6 = ssub.s32 1, %s4
  %s7 = scalar_select 0, %s6, %s4
  $region1: #{tpu_custom_call.1} parent=0
    #allocation2 [shape = 'u8[4096]{0}', space=vmem, size = 0x1000, scoped, tag = 'input window, operand 0, single buffered']
    #allocation3 [shape = 's32[1]{0}', space=sflag, size = 0x4, scoped, tag = 'scoped memory for tpu_custom_call.1']
    #allocation4 [shape = 's32[1]{0}', space=sflag, size = 0x4, scoped, tag = 'scoped memory for tpu_custom_call.1']
    #allocation5 [shape = 'u8[28672]{0}', space=vmem, size = 0x7000, scoped, tag = 'input window, operand 1, single buffered']
    #allocation6 [shape = 's32[1]{0}', space=sflag, size = 0x4, scoped, tag = 'scoped memory for tpu_custom_call.1']
    #allocation7 [shape = 'u8[4096]{0}', space=vmem, size = 0x1000, scoped, tag = 'output window, operand 0, single buffered']
    %8 = vsyncpa [#allocation3], 0
    %9 = vsyncpa [#allocation6], 0
    %10 = vsyncpa [#allocation4], 0
    // Predicated region
    $region2: #{tpu_custom_call.1} parent=1 // pred_check
      _
    $region3: #{tpu_custom_call.1} parent=1 // pred_check_branch
      %12 = sbr.rel (0) target = $region5
    $region4: #{tpu_custom_call.1} parent=1 // pred_region
      %s14 = ssub.s32 128, 128
      %15 = vsyncadd [#allocation3], %s14
      %s17 = sshll.u32 [#allocation2], 4
      %s18 = int_to_ptr.vmem [resolvable:$true] %s17
      %20 = dma.hbm_to_vmem [thread:$0]  %s0, 128, %s18, [#allocation3]
    $region5: #{tpu_custom_call.1} parent=1 // pred_fallthru
      _
    // Predicated region
    $region6: #{tpu_custom_call.1} parent=1 // pred_check
      _
    $region7: #{tpu_custom_call.1} parent=1 // pred_check_branch
      %22 = sbr.rel (0) target = $region9
    $region8: #{tpu_custom_call.1} parent=1 // pred_region
      %s24 = ssub.s32 896, 896
      %25 = vsyncadd [#allocation6], %s24
      %s26 = sshll.u32 [#allocation5], 4
      %s27 = int_to_ptr.vmem [resolvable:$true] %s26
      %32 = dma.hbm_to_vmem [thread:$0]  %s1, 896, %s27, [#allocation6], 128, 128, 8
    $region9: #{tpu_custom_call.1} parent=1 // pred_fallthru
      _
    // Predicated region
    $region10: #{tpu_custom_call.1} parent=1 // pred_check
      _
    $region11: #{tpu_custom_call.1} parent=1 // pred_check_branch
      %34 = sbr.rel (0) target = $region13
    $region12: #{tpu_custom_call.1} parent=1 // pred_region
      _
    $region13: #{tpu_custom_call.1} parent=1 // pred_fallthru
      _
    // Predicated region
    $region14: #{tpu_custom_call.1} parent=1 // pred_check
      _
    $region15: #{tpu_custom_call.1} parent=1 // pred_check_branch
      %36 = sbr.rel (0) target = $region17
    $region16: #{tpu_custom_call.1} parent=1 // pred_region
      %37 = dma.done [#allocation3], 128
    $region17: #{tpu_custom_call.1} parent=1 // pred_fallthru
      _
    // Predicated region
    $region18: #{tpu_custom_call.1} parent=1 // pred_check
      _
    $region19: #{tpu_custom_call.1} parent=1 // pred_check_branch
      %39 = sbr.rel (0) target = $region21
    $region20: #{tpu_custom_call.1} parent=1 // pred_region
      %40 = dma.done [#allocation6], 896
    $region21: #{tpu_custom_call.1} parent=1 // pred_fallthru
      _
    %v41 = vld [vmem:[#allocation2] sm:$0xff]
    %v42 = vld [vmem:[#allocation5] sm:$0xff]
    %v43 = vld [vmem:[#allocation5 + $0x8] sm:$0xff]
    %v44 = vld [vmem:[#allocation5 + $0x10] sm:$0xff]
    %v45 = vld [vmem:[#allocation5 + $0x18] sm:$0xff]
    %v46 = vld [vmem:[#allocation5 + $0x20] sm:$0xff]
    %v47 = vld [vmem:[#allocation5 + $0x28] sm:$0xff]
    %v48 = vld [vmem:[#allocation5 + $0x30] sm:$0xff]
    %v49 = vld [vmem:[%s2] sm:$0x1]
    %v51 = vlaneseq
    %v52 = vshrl.u32 %v51, 7
    %v53 = vsub.s32 0, %v52
    %v54 = vrot.slane %v49, %v53
    %vm56 = vcmask 457728
    %v58 = vsel %vm56, %v41, 0
    %60 = vmatprep.subr.mxu0 0.0
    %61 = vmatpush1.msra.mxu0 %v42
    %62 = vmatprep.subr.mxu0 0.0
    %63 = vmatpush1.msra.mxu0 %v43
    %64 = vmatprep.subr.mxu0 0.0
    %65 = vmatpush1.msra.mxu0 %v44
    %66 = vmatprep.subr.mxu0 0.0
    %67 = vmatpush1.msra.mxu0 %v45
    %68 = vmatprep.subr.mxu0 0.0
    %69 = vmatpush1.msra.mxu0 %v46
    %70 = vmatprep.subr.mxu0 0.0
    %71 = vmatpush1.msra.mxu0 %v47
    %72 = vmatprep.subr.mxu0 0.0
    %73 = vmatpush1.msra.mxu0 %v48
    %74 = vmatprep.subr.mxu0 0.0
    %75 = vmatpush1.msra.mxu0 0.0
    %76 = vmatprep.subr.mxu0 0.0
    %77 = vmatpush1.msra.mxu0 0.0
    %78 = vmatprep.subr.mxu0 0.0
    %79 = vmatpush1.msra.mxu0 0.0
    %80 = vmatprep.subr.mxu0 0.0
    %81 = vmatpush1.msra.mxu0 0.0
    %82 = vmatprep.subr.mxu0 0.0
    %83 = vmatpush1.msra.mxu0 0.0
    %84 = vmatprep.subr.mxu0 0.0
    %85 = vmatpush1.msra.mxu0 0.0
    %86 = vmatprep.subr.mxu0 0.0
    %87 = vmatpush1.msra.mxu0 0.0
    %88 = vmatprep.subr.mxu0 0.0
    %89 = vmatpush1.msra.mxu0 0.0
    %90 = vmatprep.subr.mxu0 0.0
    %91 = vmatpush1.msra.mxu0 0.0
    %92 = vmatprep.subr.mxu0 0.0
    %93 = vmatpush1.msra.mxu0 0.0
    %94 = vmatprep.subr.mxu0 0.0
    %95 = vmatpush1.msra.mxu0 0.0
    %96 = vmatprep.subr.mxu0 0.0
    %97 = vmatpush1.msra.mxu0 0.0
    %98 = vmatprep.subr.mxu0 0.0
    %99 = vmatpush1.msra.mxu0 0.0
    %100 = vmatprep.subr.mxu0 0.0
    %101 = vmatpush1.msra.mxu0 0.0
    %102 = vmatprep.subr.mxu0 0.0
    %103 = vmatpush1.msra.mxu0 0.0
    %104 = vmatprep.subr.mxu0 0.0
    %105 = vmatpush1.msra.mxu0 0.0
    %106 = vmatprep.subr.mxu0 0.0
    %107 = vmatpush1.msra.mxu0 0.0
    %108 = vmatprep.subr.mxu0 0.0
    %109 = vmatpush1.msra.mxu0 0.0
    %110 = vmatprep.subr.mxu0 0.0
    %111 = vmatpush1.msra.mxu0 0.0
    %112 = vmatprep.subr.mxu0 0.0
    %113 = vmatpush1.msra.mxu0 0.0
    %114 = vmatprep.subr.mxu0 0.0
    %115 = vmatpush1.msra.mxu0 0.0
    %116 = vmatprep.subr.mxu0 0.0
    %117 = vmatpush1.msra.mxu0 0.0
    %118 = vmatprep.subr.mxu0 0.0
    %119 = vmatpush1.msra.mxu0 0.0
    %120 = vmatprep.subr.mxu0 0.0
    %121 = vmatpush1.msra.mxu0 0.0
    %122 = vmatprep.subr.mxu0 0.0
    %123 = vmatpush1.msra.mxu0 0.0
    %124 = vmatprep.mubr.f32.mxu0 0.0
    %125 = vmatmul.mubr.f32.gmra.mrb[0].mxu0 %v58
    %v126 = vpop.f32.mrb[0].mxu0
    %v127 = vadd.f32 %v54, %v126
    %v128 = vpop.f32.mrb[0].mxu0
    %129 = vdwg.mxu0
    %130 = vst [vmem:[#allocation7] sm:$0xff] %v127
    // Predicated region
    $region22: #{tpu_custom_call.1} parent=1 // pred_check
      _
    $region23: #{tpu_custom_call.1} parent=1 // pred_check_branch
      %132 = sbr.rel (0) target = $region25
    $region24: #{tpu_custom_call.1} parent=1 // pred_region
      %s134 = ssub.s32 128, 128
      %135 = vsyncadd [#allocation4], %s134
      %s137 = sshll.u32 [#allocation7], 4
      %s138 = int_to_ptr.vmem [resolvable:$true] %s137
      %140 = dma.vmem_to_hbm [thread:$0]  %s138, 128, %s3, [#allocation4]
    $region25: #{tpu_custom_call.1} parent=1 // pred_fallthru
      _
    // Predicated region
    $region26: #{tpu_custom_call.1} parent=1 // pred_check
      _
    $region27: #{tpu_custom_call.1} parent=1 // pred_check_branch
      %142 = sbr.rel (0) target = $region29
    $region28: #{tpu_custom_call.1} parent=1 // pred_region
      %143 = dma.done [#allocation4], 128
    $region29: #{tpu_custom_call.1} parent=1 // pred_fallthru
      _
    %144 = vsyncpa [#allocation3], 1
    %145 = vsyncpa [#allocation6], 1
    %146 = vsyncpa [#allocation4], 1

</llo_original>
